<compile_context>
chip_gen: v5e
topology: v5e:2x2
jax: 0.10.0
libtpu: 0.0.40
codegen_flags: <defaults>
</compile_context>

<pallas_src>
import functools

import jax
import jax.numpy as jnp
from jax.experimental import pallas as pl
from jax.experimental.pallas import tpu as pltpu


def _round_up(x, m):
    return ((x + m - 1) // m) * m


# ---------------------------------------------------------------------------
# Kernel
# ---------------------------------------------------------------------------
def _pointnet_kernel(x_ref, w1_ref, b1_ref, w2_ref, b2_ref, w3_ref, b3_ref,
                     out_ref, acc_ref, *, n_valid, tile_n, tiles_per_split,
                     compute_dtype, guard_ragged):
    c = pl.program_id(0)           # split axis ("parallel"; per-TC on v7x)
    t = pl.program_id(1)           # point-tile axis (carried running max)
    n_tiles = pl.num_programs(1)

    @pl.when(t == 0)
    def _init():
        # ReLU output is >= 0, so a zero init can never exceed the true max.
        acc_ref[...] = jnp.zeros_like(acc_ref)

    def mlp():
        x = x_ref[...].astype(compute_dtype)           # f32 HBM stream -> bf16
        h1 = jnp.maximum(
            jnp.dot(x, w1_ref[...], preferred_element_type=jnp.float32)
            + b1_ref[...], 0.0)
        h2 = jnp.maximum(
            jnp.dot(h1.astype(compute_dtype), w2_ref[...],
                    preferred_element_type=jnp.float32) + b2_ref[...], 0.0)
        h3 = jnp.maximum(
            jnp.dot(h2.astype(compute_dtype), w3_ref[...],
                    preferred_element_type=jnp.float32) + b3_ref[...], 0.0)
        return h3

    def fold(h3):
        # (tile_n, H3p) -> (8, H3p): vreg-vs-vreg max on the VPU, no per-tile
        # sublane (XLU) reduce and no narrow per-tile store.
        h3p = h3.shape[-1]
        part8 = jnp.max(h3.reshape(tile_n // 8, 8, h3p), axis=0)
        acc_ref[...] = jnp.maximum(acc_ref[...], part8)

    if not guard_ragged:
        # Point count divides the tiling exactly: no masking anywhere.
        fold(mlp())
    else:
        tile_start = (c * tiles_per_split + t) * tile_n
        valid_rows = n_valid - tile_start               # may be <= 0

        @pl.when(valid_rows > 0)                        # skip fully-OOB tiles
        def _compute():
            h3 = mlp()

            @pl.when(valid_rows >= tile_n)              # full tile: no mask
            def _full():
                fold(h3)

            @pl.when(valid_rows < tile_n)               # the one ragged tile
            def _ragged():
                row = jax.lax.broadcasted_iota(jnp.int32, (tile_n, 1), 0)
                fold(jnp.where(row < valid_rows, h3, 0.0))

    @pl.when(t == n_tiles - 1)
    def _epilogue():
        # One 8->1 sublane reduce + one narrow store per split.
        m = jnp.max(acc_ref[...], axis=0, keepdims=True)
        out_ref[...] = m.reshape(out_ref.shape)


# ---------------------------------------------------------------------------
# Generation-aware configuration
# ---------------------------------------------------------------------------
def _chip_config():
    kind = ""
    try:
        kind = jax.devices()[0].device_kind.lower()
    except Exception:
        pass
    if "v7" in kind:
        # v7x: 64 MiB physical VMEM per TensorCore, 2 TCs per chip.
        cfg = dict(num_splits=2, vmem_limit=40 << 20, tile_budget=28 << 20,
                   core_parallel=True)
    else:
        # v5e / v6e / unknown: single TC, 128 MiB physical VMEM
        # (v5e's 16 MiB scoped default is raised via vmem_limit_bytes).
        cfg = dict(num_splits=1, vmem_limit=64 << 20, tile_budget=44 << 20,
                   core_parallel=False)
    try:  # best effort: never budget more than ~3/4 of physical VMEM
        phys = int(pltpu.get_tpu_info().vmem_capacity_bytes)
        cfg["vmem_limit"] = min(cfg["vmem_limit"], (phys * 3) // 4)
        cfg["tile_budget"] = min(cfg["tile_budget"], (phys * 9) // 16)
    except Exception:
        pass
    return cfg


def _pick_tile_cap(budget, f, h1p, h2p, h3p, x_bytes, w_bytes):
    """Largest point-tile (multiple of 512) whose VMEM footprint fits budget."""
    fixed = 2 * w_bytes * (f * h1p + h1p * h2p + h2p * h3p)   # dbl-buf weights
    fixed += 2 * 4 * (h1p + h2p + h3p)                         # dbl-buf biases
    fixed += (8 + 2) * h3p * 4                                 # acc scratch+out
    per_row = 2 * f * x_bytes                                  # dbl-buf x DMA
    per_row += 4 * (h1p + h2p + h3p)                           # f32 intermediates
    per_row += w_bytes * (f + h1p + h2p)                       # bf16 MXU casts
    avail = max(budget - fixed, 512 * per_row)
    return max(512, (avail // per_row) // 512 * 512)


# ---------------------------------------------------------------------------
# Parameter prep (done ONCE, not per forward call) and forward wrapper
# ---------------------------------------------------------------------------
def prepare_params(w1, b1, w2, b2, w3, b3, compute_dtype=jnp.bfloat16):
    """Pad hidden widths to 128 lanes and cast weights once at load time."""
    f, h1 = w1.shape
    h2 = w2.shape[1]
    h3 = w3.shape[1]
    h1p, h2p, h3p = (_round_up(h, 128) for h in (h1, h2, h3))

    def pad2(a, rows, cols, dtype):
        return jnp.pad(a, ((0, rows - a.shape[0]),
                           (0, cols - a.shape[1]))).astype(dtype)

    return dict(
        w1=pad2(w1, f, h1p, compute_dtype),   b1=pad2(b1, 1, h1p, jnp.float32),
        w2=pad2(w2, h1p, h2p, compute_dtype), b2=pad2(b2, 1, h2p, jnp.float32),
        w3=pad2(w3, h2p, h3p, compute_dtype), b3=pad2(b3, 1, h3p, jnp.float32),
        f=f, h3=h3, h1p=h1p, h2p=h2p, h3p=h3p, compute_dtype=compute_dtype)


def pointnet_forward(x, params, *, tile_n=None, num_splits=None):
    """x: (N, F) float32.  Returns (1, H3) float32."""
    n, f = x.shape
    assert f == params["f"], "feature size mismatch"
    cd = params["compute_dtype"]
    h1p, h2p, h3p, h3 = params["h1p"], params["h2p"], params["h3p"], params["h3"]

    cfg = _chip_config()
    if num_splits is None:
        num_splits = cfg["num_splits"]
    num_splits = max(1, int(num_splits))

    w_bytes = jnp.dtype(cd).itemsize
    tile_cap = _pick_tile_cap(cfg["tile_budget"], f, h1p, h2p, h3p,
                              x_bytes=x.dtype.itemsize, w_bytes=w_bytes)
    requested = 8192 if tile_n is None else int(tile_n)
    tile_cap = min(tile_cap, max(requested, 16))

    pack = 16 if w_bytes == 2 else 8       # bf16 sublane pack factor
    rows_per_split = pl.cdiv(n, num_splits)
    tile_n_eff = max(pack, min(tile_cap, _round_up(rows_per_split, pack)))
    tile_n_eff = _round_up(tile_n_eff, pack)
    tiles_per_split = pl.cdiv(rows_per_split, tile_n_eff)

    n_blocks = pl.cdiv(n, tile_n_eff)      # real x blocks (x is NOT padded)
    guard_ragged = (num_splits * tiles_per_split * tile_n_eff) != n

    kernel = functools.partial(
        _pointnet_kernel, n_valid=n, tile_n=tile_n_eff,
        tiles_per_split=tiles_per_split, compute_dtype=cd,
        guard_ragged=guard_ragged)

    def x_index(c, t):
        # Clamp so out-of-range grid steps still issue an in-bounds DMA;
        # the kernel skips their compute (valid_rows <= 0).
        return (jnp.minimum(c * tiles_per_split + t, n_blocks - 1), 0)

    def const_spec(shape):
        return pl.BlockSpec(shape, lambda c, t: (0,) * len(shape))

    flops = 2 * num_splits * tiles_per_split * tile_n_eff * (
        f * h1p + h1p * h2p + h2p * h3p)
    bytes_accessed = (x.size * x.dtype.itemsize
                      + sum(params[k].size * params[k].dtype.itemsize
                            for k in ("w1", "b1", "w2", "b2", "w3", "b3"))
                      + num_splits * h3p * 4)

    def call(dim_sem):
        return pl.pallas_call(
            kernel,
            out_shape=jax.ShapeDtypeStruct((num_splits, 1, h3p), jnp.float32),
            grid=(num_splits, tiles_per_split),
            in_specs=[
                pl.BlockSpec((tile_n_eff, f), x_index),
                const_spec((f, h1p)),   const_spec((1, h1p)),
                const_spec((h1p, h2p)), const_spec((1, h2p)),
                # TODO(synk): for realistic PointNet widths on v7x, put
                # pipeline_mode=pl.Buffered(1) on these resident weight specs
                # to reclaim the default double-buffer VMEM.
                const_spec((h2p, h3p)), const_spec((1, h3p)),
            ],
            out_specs=pl.BlockSpec((1, 1, h3p), lambda c, t: (c, 0, 0)),
            scratch_shapes=[pltpu.VMEM((8, h3p), jnp.float32)],
            compiler_params=pltpu.CompilerParams(
                dimension_semantics=dim_sem,
                vmem_limit_bytes=cfg["vmem_limit"]),
            cost_estimate=pl.CostEstimate(
                flops=flops, transcendentals=0, bytes_accessed=bytes_accessed),
        )(x, params["w1"], params["b1"], params["w2"], params["b2"],
          params["w3"], params["b3"])

    if num_splits > 1 and cfg["core_parallel"]:
        try:    # shard the split axis across v7x's two TensorCores
            out = call((pltpu.CORE_PARALLEL, pltpu.ARBITRARY))
        except Exception:
            out = call(("parallel", "arbitrary"))
    else:
        out = call(("parallel", "arbitrary"))

    # Combine per-split partial maxima, drop the lane padding.
    return jnp.max(out[:, 0, :], axis=0, keepdims=True)[:, :h3]


# ---------------------------------------------------------------------------
# Deterministic synthetic parameters + pure-JAX reference
# ---------------------------------------------------------------------------
def init_params(key, feature_size, hidden_size_1, hidden_size_2, hidden_size_3):
    """nn.Linear-style init, weights stored transposed (in, out)."""
    ks = jax.random.split(key, 6)

    def linear(kw, kb, fan_in, fan_out):
        bound = 1.0 / jnp.sqrt(jnp.float32(fan_in))
        w = jax.random.uniform(kw, (fan_in, fan_out), jnp.float32, -bound, bound)
        b = jax.random.uniform(kb, (1, fan_out), jnp.float32, -bound, bound)
        return w, b

    w1, b1 = linear(ks[0], ks[1], feature_size, hidden_size_1)
    w2, b2 = linear(ks[2], ks[3], hidden_size_1, hidden_size_2)
    w3, b3 = linear(ks[4], ks[5], hidden_size_2, hidden_size_3)
    return w1, b1, w2, b2, w3, b3


def reference_forward(x, w1, b1, w2, b2, w3, b3, compute_dtype=jnp.bfloat16):
    """Pure-JAX reference mirroring the kernel's bf16-input / f32-accum math."""
    cd = compute_dtype
    h1 = jax.nn.relu(jnp.dot(x.astype(cd), w1.astype(cd),
                             preferred_element_type=jnp.float32) + b1)
    h2 = jax.nn.relu(jnp.dot(h1.astype(cd), w2.astype(cd),
                             preferred_element_type=jnp.float32) + b2)
    h3 = jax.nn.relu(jnp.dot(h2.astype(cd), w3.astype(cd),
                             preferred_element_type=jnp.float32) + b3)
    return jnp.max(h3, axis=0, keepdims=True)


if __name__ == "__main__":
    key = jax.random.PRNGKey(0)
    k_x, k_p, k_x2 = jax.random.split(key, 3)

    # Small shapes consistent with the module's forward.
    N = 8
    feature_size, h1_sz, h2_sz, h3_sz = 16, 32, 32, 64

    raw = init_params(k_p, feature_size, h1_sz, h2_sz, h3_sz)
    params = prepare_params(*raw)      # pad + cast once, not per forward call

    # Case 1: tiny N (single tile, ragged rows masked in-kernel).
    x = jax.random.normal(k_x, (N, feature_size), jnp.float32)
    out = jax.block_until_ready(pointnet_forward(x, params))
    ref = reference_forward(x, *raw)
    assert out.shape == (1, h3_sz)
    assert jnp.allclose(out, ref, atol=1e-3, rtol=1e-3), "mismatch vs reference"

    # Case 2: multi-tile pipeline + running max + ragged tail.
    N2 = 300
    x2 = jax.random.normal(k_x2, (N2, feature_size), jnp.float32)
    out2 = jax.block_until_ready(pointnet_forward(x2, params, tile_n=64))
    ref2 = reference_forward(x2, *raw)
    assert out2.shape == (1, h3_sz)
    assert jnp.allclose(out2, ref2, atol=1e-3, rtol=1e-3), "mismatch (tiled)"

    # Case 3: forced 2-way split (exercises clamped/skipped tiles + cross-split max).
    out3 = jax.block_until_ready(
        pointnet_forward(x2, params, tile_n=64, num_splits=2))
    assert jnp.allclose(out3, ref2, atol=1e-3, rtol=1e-3), "mismatch (split)"

    print("KERNEL_OK")
</pallas_src>

<mosaic_0001>
module attributes {stable_mosaic.version = 11 : i64} {
  func.func @_pointnet_kernel(%arg0: i32, %arg1: i32, %arg2: memref<16x16xf32, #tpu.memory_space<vmem>>, %arg3: memref<16x128xbf16, #tpu.memory_space<vmem>>, %arg4: memref<1x128xf32, #tpu.memory_space<vmem>>, %arg5: memref<128x128xbf16, #tpu.memory_space<vmem>>, %arg6: memref<1x128xf32, #tpu.memory_space<vmem>>, %arg7: memref<128x128xbf16, #tpu.memory_space<vmem>>, %arg8: memref<1x128xf32, #tpu.memory_space<vmem>>, %arg9: memref<1x1x128xf32, #tpu.memory_space<vmem>>, %arg10: memref<8x128xf32, #tpu.memory_space<vmem>>) attributes {dimension_semantics = [#tpu.dimension_semantics<parallel>, #tpu.dimension_semantics<arbitrary>], iteration_bounds = array<i64: 1, 1>, scalar_prefetch = 0 : i64, scratch_operands = 1 : i64, tpu.core_type = #tpu.core_type<tc>, window_params = [{transform_indices = @transform_0, window_bounds = array<i64: 16, 16>}, {pipeline_mode = #tpu.pipeline_mode<synchronous>, transform_indices = @transform_1, window_bounds = array<i64: 16, 128>}, {pipeline_mode = #tpu.pipeline_mode<synchronous>, transform_indices = @transform_2, window_bounds = array<i64: 1, 128>}, {pipeline_mode = #tpu.pipeline_mode<synchronous>, transform_indices = @transform_3, window_bounds = array<i64: 128, 128>}, {pipeline_mode = #tpu.pipeline_mode<synchronous>, transform_indices = @transform_4, window_bounds = array<i64: 1, 128>}, {pipeline_mode = #tpu.pipeline_mode<synchronous>, transform_indices = @transform_5, window_bounds = array<i64: 128, 128>}, {pipeline_mode = #tpu.pipeline_mode<synchronous>, transform_indices = @transform_6, window_bounds = array<i64: 1, 128>}, {transform_indices = @transform_7, window_bounds = array<i64: 1, 1, 128>}]} {
    %c0_i32 = arith.constant 0 : i32
    %0 = arith.cmpi eq, %arg1, %c0_i32 : i32
    %1 = arith.extui %0 : i1 to i32
    %c0_i32_0 = arith.constant 0 : i32
    %2 = arith.cmpi ne, %1, %c0_i32_0 : i32
    scf.if %2 {
      %cst = arith.constant 0.000000e+00 : f32
      %13 = vector.broadcast %cst : f32 to vector<8x128xf32>
      %c0 = arith.constant 0 : index
      %c0_5 = arith.constant 0 : index
      %14 = vector.load %arg10[%c0, %c0_5] : memref<8x128xf32, #tpu.memory_space<vmem>>, vector<8x128xf32>
      tpu.vector_store %arg10[%c0, %c0_5], %13 {strides = array<i32>} : memref<8x128xf32, #tpu.memory_space<vmem>>, vector<8x128xf32>,
    } else {
    }
    %c1_i32 = arith.constant 1 : i32
    %3 = arith.muli %arg0, %c1_i32 : i32
    %4 = arith.addi %3, %arg1 : i32
    %c16_i32 = arith.constant 16 : i32
    %5 = arith.muli %4, %c16_i32 : i32
    %c8_i32 = arith.constant 8 : i32
    %6 = arith.subi %c8_i32, %5 : i32
    %c0_i32_1 = arith.constant 0 : i32
    %7 = arith.cmpi sgt, %6, %c0_i32_1 : i32
    %8 = arith.extui %7 : i1 to i32
    %c0_i32_2 = arith.constant 0 : i32
    %9 = arith.cmpi ne, %8, %c0_i32_2 : i32
    scf.if %9 {
      %c0 = arith.constant 0 : index
      %c0_5 = arith.constant 0 : index
      %13 = vector.load %arg2[%c0, %c0_5] : memref<16x16xf32, #tpu.memory_space<vmem>>, vector<16x16xf32>
      %14 = arith.truncf %13 : vector<16x16xf32> to vector<16x16xbf16>
      %c0_6 = arith.constant 0 : index
      %c0_7 = arith.constant 0 : index
      %15 = vector.load %arg3[%c0_6, %c0_7] : memref<16x128xbf16, #tpu.memory_space<vmem>>, vector<16x128xbf16>
      %cst = arith.constant dense<0.000000e+00> : vector<16x128xf32>
      %16 = tpu.matmul %14, %15, %cst {dimension_numbers = #tpu.dot_dimension_numbers<[1], [0], [0], [1], [0, 0, 1, 1], [], []>} : vector<16x16xbf16>, vector<16x128xbf16>, vector<16x128xf32> -> vector<16x128xf32>
      %c0_8 = arith.constant 0 : index
      %c0_9 = arith.constant 0 : index
      %17 = vector.load %arg4[%c0_8, %c0_9] : memref<1x128xf32, #tpu.memory_space<vmem>>, vector<1x128xf32>
      %18 = vector.broadcast %17 : vector<1x128xf32> to vector<16x128xf32>
      %19 = arith.addf %16, %18 : vector<16x128xf32>
      %cst_10 = arith.constant 0.000000e+00 : f32
      %20 = vector.broadcast %cst_10 : f32 to vector<16x128xf32>
      %21 = arith.maximumf %19, %20 : vector<16x128xf32>
      %22 = arith.truncf %21 : vector<16x128xf32> to vector<16x128xbf16>
      %c0_11 = arith.constant 0 : index
      %c0_12 = arith.constant 0 : index
      %23 = vector.load %arg5[%c0_11, %c0_12] : memref<128x128xbf16, #tpu.memory_space<vmem>>, vector<128x128xbf16>
      %cst_13 = arith.constant dense<0.000000e+00> : vector<16x128xf32>
      %24 = tpu.matmul %22, %23, %cst_13 {dimension_numbers = #tpu.dot_dimension_numbers<[1], [0], [0], [1], [0, 0, 1, 1], [], []>} : vector<16x128xbf16>, vector<128x128xbf16>, vector<16x128xf32> -> vector<16x128xf32>
      %c0_14 = arith.constant 0 : index
      %c0_15 = arith.constant 0 : index
      %25 = vector.load %arg6[%c0_14, %c0_15] : memref<1x128xf32, #tpu.memory_space<vmem>>, vector<1x128xf32>
      %26 = vector.broadcast %25 : vector<1x128xf32> to vector<16x128xf32>
      %27 = arith.addf %24, %26 : vector<16x128xf32>
      %cst_16 = arith.constant 0.000000e+00 : f32
      %28 = vector.broadcast %cst_16 : f32 to vector<16x128xf32>
      %29 = arith.maximumf %27, %28 : vector<16x128xf32>
      %30 = arith.truncf %29 : vector<16x128xf32> to vector<16x128xbf16>
      %c0_17 = arith.constant 0 : index
      %c0_18 = arith.constant 0 : index
      %31 = vector.load %arg7[%c0_17, %c0_18] : memref<128x128xbf16, #tpu.memory_space<vmem>>, vector<128x128xbf16>
      %cst_19 = arith.constant dense<0.000000e+00> : vector<16x128xf32>
      %32 = tpu.matmul %30, %31, %cst_19 {dimension_numbers = #tpu.dot_dimension_numbers<[1], [0], [0], [1], [0, 0, 1, 1], [], []>} : vector<16x128xbf16>, vector<128x128xbf16>, vector<16x128xf32> -> vector<16x128xf32>
      %c0_20 = arith.constant 0 : index
      %c0_21 = arith.constant 0 : index
      %33 = vector.load %arg8[%c0_20, %c0_21] : memref<1x128xf32, #tpu.memory_space<vmem>>, vector<1x128xf32>
      %34 = vector.broadcast %33 : vector<1x128xf32> to vector<16x128xf32>
      %35 = arith.addf %32, %34 : vector<16x128xf32>
      %cst_22 = arith.constant 0.000000e+00 : f32
      %36 = vector.broadcast %cst_22 : f32 to vector<16x128xf32>
      %37 = arith.maximumf %35, %36 : vector<16x128xf32>
      %c16_i32_23 = arith.constant 16 : i32
      %38 = arith.cmpi sge, %6, %c16_i32_23 : i32
      %39 = arith.extui %38 : i1 to i32
      %c0_i32_24 = arith.constant 0 : i32
      %40 = arith.cmpi ne, %39, %c0_i32_24 : i32
      scf.if %40 {
        %44 = vector.shape_cast %37 : vector<16x128xf32> to vector<2x8x128xf32>
        %cst_27 = arith.constant dense<0xFF800000> : vector<8x128xf32>
        %45 = vector.multi_reduction <maximumf>, %44, %cst_27 [0] : vector<2x8x128xf32> to vector<8x128xf32>
        %c0_28 = arith.constant 0 : index
        %c0_29 = arith.constant 0 : index
        %46 = vector.load %arg10[%c0_28, %c0_29] : memref<8x128xf32, #tpu.memory_space<vmem>>, vector<8x128xf32>
        %47 = arith.maximumf %46, %45 : vector<8x128xf32>
        %c0_30 = arith.constant 0 : index
        %c0_31 = arith.constant 0 : index
        %48 = vector.load %arg10[%c0_30, %c0_31] : memref<8x128xf32, #tpu.memory_space<vmem>>, vector<8x128xf32>
        tpu.vector_store %arg10[%c0_30, %c0_31], %47 {strides = array<i32>} : memref<8x128xf32, #tpu.memory_space<vmem>>, vector<8x128xf32>,
      } else {
      }
      %c16_i32_25 = arith.constant 16 : i32
      %41 = arith.cmpi slt, %6, %c16_i32_25 : i32
      %42 = arith.extui %41 : i1 to i32
      %c0_i32_26 = arith.constant 0 : i32
      %43 = arith.cmpi ne, %42, %c0_i32_26 : i32
      scf.if %43 {
        %44 = tpu.iota {dimensions = array<i32: 0>} : vector<16x1xi32>
        %45 = vector.broadcast %6 : i32 to vector<16x1xi32>
        %46 = arith.cmpi slt, %44, %45 : vector<16x1xi32>
        %cst_27 = arith.constant 0.000000e+00 : f32
        %47 = vector.shape_cast %46 : vector<16x1xi1> to vector<16x1xi1>
        %48 = vector.broadcast %47 : vector<16x1xi1> to vector<16x128xi1>
        %49 = vector.broadcast %cst_27 : f32 to vector<16x128xf32>
        %50 = arith.select %48, %37, %49 : vector<16x128xi1>, vector<16x128xf32>
        %51 = vector.shape_cast %50 : vector<16x128xf32> to vector<2x8x128xf32>
        %cst_28 = arith.constant dense<0xFF800000> : vector<8x128xf32>
        %52 = vector.multi_reduction <maximumf>, %51, %cst_28 [0] : vector<2x8x128xf32> to vector<8x128xf32>
        %c0_29 = arith.constant 0 : index
        %c0_30 = arith.constant 0 : index
        %53 = vector.load %arg10[%c0_29, %c0_30] : memref<8x128xf32, #tpu.memory_space<vmem>>, vector<8x128xf32>
        %54 = arith.maximumf %53, %52 : vector<8x128xf32>
        %c0_31 = arith.constant 0 : index
        %c0_32 = arith.constant 0 : index
        %55 = vector.load %arg10[%c0_31, %c0_32] : memref<8x128xf32, #tpu.memory_space<vmem>>, vector<8x128xf32>
        tpu.vector_store %arg10[%c0_31, %c0_32], %54 {strides = array<i32>} : memref<8x128xf32, #tpu.memory_space<vmem>>, vector<8x128xf32>,
      } else {
      }
    } else {
    }
    %c0_i32_3 = arith.constant 0 : i32
    %10 = arith.cmpi eq, %arg1, %c0_i32_3 : i32
    %11 = arith.extui %10 : i1 to i32
    %c0_i32_4 = arith.constant 0 : i32
    %12 = arith.cmpi ne, %11, %c0_i32_4 : i32
    scf.if %12 {
      %c0 = arith.constant 0 : index
      %c0_5 = arith.constant 0 : index
      %13 = vector.load %arg10[%c0, %c0_5] : memref<8x128xf32, #tpu.memory_space<vmem>>, vector<8x128xf32>
      %cst = arith.constant dense<0xFF800000> : vector<128xf32>
      %14 = vector.multi_reduction <maximumf>, %13, %cst [0] : vector<8x128xf32> to vector<128xf32>
      %15 = vector.shape_cast %14 : vector<128xf32> to vector<1x128xf32>
      %16 = vector.shape_cast %15 : vector<1x128xf32> to vector<1x1x128xf32>
      %c0_6 = arith.constant 0 : index
      %c0_7 = arith.constant 0 : index
      %c0_8 = arith.constant 0 : index
      %17 = vector.load %arg9[%c0_6, %c0_7, %c0_8] : memref<1x1x128xf32, #tpu.memory_space<vmem>>, vector<1x1x128xf32>
      tpu.vector_store %arg9[%c0_6, %c0_7, %c0_8], %16 {strides = array<i32>} : memref<1x1x128xf32, #tpu.memory_space<vmem>>, vector<1x1x128xf32>,
    } else {
    }
    return
  }
  func.func @transform_0(%arg0: i32, %arg1: i32) -> (i32, i32) {
    %c1_i32 = arith.constant 1 : i32
    %0 = arith.muli %arg0, %c1_i32 : i32
    %1 = arith.addi %0, %arg1 : i32
    %c0_i32 = arith.constant 0 : i32
    %2 = arith.minsi %1, %c0_i32 : i32
    %c0_i32_0 = arith.constant 0 : i32
    %c0_i32_1 = arith.constant 0 : i32
    return %2, %c0_i32_0 : i32, i32
  }
  func.func @transform_1(%arg0: i32, %arg1: i32) -> (i32, i32) {
    %c0_i32 = arith.constant 0 : i32
    %c0_i32_0 = arith.constant 0 : i32
    %c0_i32_1 = arith.constant 0 : i32
    return %c0_i32, %c0_i32_0 : i32, i32
  }
  func.func @transform_2(%arg0: i32, %arg1: i32) -> (i32, i32) {
    %c0_i32 = arith.constant 0 : i32
    %c0_i32_0 = arith.constant 0 : i32
    %c0_i32_1 = arith.constant 0 : i32
    return %c0_i32, %c0_i32_0 : i32, i32
  }
  func.func @transform_3(%arg0: i32, %arg1: i32) -> (i32, i32) {
    %c0_i32 = arith.constant 0 : i32
    %c0_i32_0 = arith.constant 0 : i32
    %c0_i32_1 = arith.constant 0 : i32
    return %c0_i32, %c0_i32_0 : i32, i32
  }
  func.func @transform_4(%arg0: i32, %arg1: i32) -> (i32, i32) {
    %c0_i32 = arith.constant 0 : i32
    %c0_i32_0 = arith.constant 0 : i32
    %c0_i32_1 = arith.constant 0 : i32
    return %c0_i32, %c0_i32_0 : i32, i32
  }
  func.func @transform_5(%arg0: i32, %arg1: i32) -> (i32, i32) {
    %c0_i32 = arith.constant 0 : i32
    %c0_i32_0 = arith.constant 0 : i32
    %c0_i32_1 = arith.constant 0 : i32
    return %c0_i32, %c0_i32_0 : i32, i32
  }
  func.func @transform_6(%arg0: i32, %arg1: i32) -> (i32, i32) {
    %c0_i32 = arith.constant 0 : i32
    %c0_i32_0 = arith.constant 0 : i32
    %c0_i32_1 = arith.constant 0 : i32
    return %c0_i32, %c0_i32_0 : i32, i32
  }
  func.func @transform_7(%arg0: i32, %arg1: i32) -> (i32, i32, i32) {
    %c0_i32 = arith.constant 0 : i32
    %c0_i32_0 = arith.constant 0 : i32
    %c0_i32_1 = arith.constant 0 : i32
    return %arg0, %c0_i32, %c0_i32_0 : i32, i32, i32
  }
}

</mosaic_0001>

<llo_original>
// kernel: tpu_custom_call.1
$region0: #{tpu_custom_call.1}
  #allocation0 [shape = 'u32[]', space=smem, size = 0x4, offset = 0x4, fixed_abs, tag = 'smem constant byte address 0x4 - core index']
  #allocation1 [shape = 'u32[72,128]{1,0:T(1,128)}', space=vmem, size = 0x9000, scoped, tag = 'internal scratch']
  #allocation2 [shape = 'f32[8,128]{1,0:T(8,128)}', space=vmem, size = 0x1000, scoped, tag = 'scratch operand']
  %s0 = inlined_call_operand.hbm [shape: f32[8,16], index: 0, kind: input, shape index: {}]
  %s1 = inlined_call_operand.hbm [shape: bf16[16,128], index: 1, kind: input, shape index: {}]
  %s2 = inlined_call_operand.vmem [shape: f32[1,128], index: 2, kind: input, shape index: {}]
  %s3 = inlined_call_operand.hbm [shape: bf16[128,128], index: 3, kind: input, shape index: {}]
  %s4 = inlined_call_operand.vmem [shape: f32[1,128], index: 4, kind: input, shape index: {}]
  %s5 = inlined_call_operand.hbm [shape: bf16[128,128], index: 5, kind: input, shape index: {}]
  %s6 = inlined_call_operand.vmem [shape: f32[1,128], index: 6, kind: input, shape index: {}]
  %s7 = inlined_call_operand.hbm [shape: f32[1,1,128], index: 7, kind: output, shape index: {}]
  %s8 = sld [smem:[#allocation0]]
  $region74: #{tpu_custom_call.1} parent=0
    _
  %s10 = ssub.s32 1, %s8
  %s11 = scalar_select 0, %s10, %s8
  $region1: #{tpu_custom_call.1} parent=0
    #allocation3 [shape = 'u8[8192]{0}', space=vmem, size = 0x2000, scoped, tag = 'input window, operand 0, single buffered']
    #allocation4 [shape = 's32[1]{0}', space=sflag, size = 0x4, scoped, tag = 'scoped memory for tpu_custom_call.1']
    #allocation5 [shape = 's32[1]{0}', space=sflag, size = 0x4, scoped, tag = 'scoped memory for tpu_custom_call.1']
    #allocation6 [shape = 'u8[4096]{0}', space=vmem, size = 0x1000, scoped, tag = 'input window, operand 1, single buffered']
    #allocation7 [shape = 's32[1]{0}', space=sflag, size = 0x4, scoped, tag = 'scoped memory for tpu_custom_call.1']
    #allocation8 [shape = 'u8[32768]{0}', space=vmem, size = 0x8000, scoped, tag = 'input window, operand 3, single buffered']
    #allocation9 [shape = 'u8[32768]{0}', space=vmem, size = 0x8000, scoped, tag = 'input window, operand 5, single buffered']
    #allocation10 [shape = 's32[1]{0}', space=sflag, size = 0x4, scoped, tag = 'scoped memory for tpu_custom_call.1']
    #allocation11 [shape = 'u8[512]{0}', space=vmem, size = 0x400, scoped, tag = 'output window, operand 0, single buffered']
    %12 = vsyncpa [#allocation4], 0
    %13 = vsyncpa [#allocation7], 0
    %14 = vsyncpa [#allocation10], 0
    %15 = vsyncpa [#allocation5], 0
    // Predicated region
    $region2: #{tpu_custom_call.1} parent=1 // pred_check
      _
    $region3: #{tpu_custom_call.1} parent=1 // pred_check_branch
      %17 = sbr.rel (0) target = $region5
    $region4: #{tpu_custom_call.1} parent=1 // pred_region
      %s18 = sadd.s32 0, 0
      %p19 = scmp.lt.s32.totalorder %s18, 0
      %s20 = scalar_select %p19, %s18, 0
      %s21 = smul.u32 2, %s20
      %s22 = ssub.s32 1, %s21
      %s23 = smul.u32 8, %s22
      %s24 = ssub.s32 16, %s23
      %s25 = sshll.u32 %s24, 4
      %26 = vsyncadd [#allocation4], %s25
      %p27 = scmp.ne.s32.totalorder 0, %s23
      %s28 = smul.addr %s21, 8
      %s29 = scalar_lea.hbm %s0, %s28
      %s30 = smul.u32 8, %s22
      %s31 = sshll.u32 %s29, 4
      %s32 = int_to_ptr.hbm [resolvable:$true] %s31
      %s33 = sshll.u32 [#allocation3], 4
      %s34 = int_to_ptr.vmem [resolvable:$true] %s33
      %s35 = sshll.u32 %s30, 4
      %39 = dma.hbm_to_vmem [thread:$0]  (%p27), %s32, %s35, %s34, [#allocation4], 128, 128, 8
    $region5: #{tpu_custom_call.1} parent=1 // pred_fallthru
      _
    // Predicated region
    $region6: #{tpu_custom_call.1} parent=1 // pred_check
      _
    $region7: #{tpu_custom_call.1} parent=1 // pred_check_branch
      %41 = sbr.rel (0) target = $region9
    $region8: #{tpu_custom_call.1} parent=1 // pred_region
      %43 = vsyncadd [#allocation7], 0
      %s44 = sshll.u32 %s1, 4
      %s45 = int_to_ptr.hbm [resolvable:$true] %s44
      %s46 = sshll.u32 [#allocation6], 4
      %s47 = int_to_ptr.vmem [resolvable:$true] %s46
      %52 = dma.hbm_to_vmem [thread:$0]  %s45, 128, %s47, [#allocation7], 64, 64, 4
    $region9: #{tpu_custom_call.1} parent=1 // pred_fallthru
      _
    // Predicated region
    $region10: #{tpu_custom_call.1} parent=1 // pred_check
      _
    $region11: #{tpu_custom_call.1} parent=1 // pred_check_branch
      %54 = sbr.rel (0) target = $region13
    $region12: #{tpu_custom_call.1} parent=1 // pred_region
      _
    $region13: #{tpu_custom_call.1} parent=1 // pred_fallthru
      _
    // Predicated region
    $region14: #{tpu_custom_call.1} parent=1 // pred_check
      _
    $region15: #{tpu_custom_call.1} parent=1 // pred_check_branch
      %56 = sbr.rel (0) target = $region17
    $region16: #{tpu_custom_call.1} parent=1 // pred_region
      %58 = vsyncadd [#allocation7], 0
      %s59 = sshll.u32 %s3, 4
      %s60 = int_to_ptr.hbm [resolvable:$true] %s59
      %s61 = sshll.u32 [#allocation8], 4
      %s62 = int_to_ptr.vmem [resolvable:$true] %s61
      %67 = dma.hbm_to_vmem [thread:$0]  %s60, 1024, %s62, [#allocation7], 64, 64, 4
    $region17: #{tpu_custom_call.1} parent=1 // pred_fallthru
      _
    // Predicated region
    $region18: #{tpu_custom_call.1} parent=1 // pred_check
      _
    $region19: #{tpu_custom_call.1} parent=1 // pred_check_branch
      %69 = sbr.rel (0) target = $region21
    $region20: #{tpu_custom_call.1} parent=1 // pred_region
      _
    $region21: #{tpu_custom_call.1} parent=1 // pred_fallthru
      _
    // Predicated region
    $region22: #{tpu_custom_call.1} parent=1 // pred_check
      _
    $region23: #{tpu_custom_call.1} parent=1 // pred_check_branch
      %71 = sbr.rel (0) target = $region25
    $region24: #{tpu_custom_call.1} parent=1 // pred_region
      %73 = vsyncadd [#allocation10], 0
      %s74 = sshll.u32 %s5, 4
      %s75 = int_to_ptr.hbm [resolvable:$true] %s74
      %s76 = sshll.u32 [#allocation9], 4
      %s77 = int_to_ptr.vmem [resolvable:$true] %s76
      %82 = dma.hbm_to_vmem [thread:$0]  %s75, 1024, %s77, [#allocation10], 64, 64, 4
    $region25: #{tpu_custom_call.1} parent=1 // pred_fallthru
      _
    // Predicated region
    $region26: #{tpu_custom_call.1} parent=1 // pred_check
      _
    $region27: #{tpu_custom_call.1} parent=1 // pred_check_branch
      %84 = sbr.rel (0) target = $region29
    $region28: #{tpu_custom_call.1} parent=1 // pred_region
      _
    $region29: #{tpu_custom_call.1} parent=1 // pred_fallthru
      _
    // Predicated region
    $region30: #{tpu_custom_call.1} parent=1 // pred_check
      _
    $region31: #{tpu_custom_call.1} parent=1 // pred_check_branch
      %86 = sbr.rel (0) target = $region33
    $region32: #{tpu_custom_call.1} parent=1 // pred_region
      %88 = dma.done [#allocation4], 256
    $region33: #{tpu_custom_call.1} parent=1 // pred_fallthru
      _
    // Predicated region
    $region34: #{tpu_custom_call.1} parent=1 // pred_check
      _
    $region35: #{tpu_custom_call.1} parent=1 // pred_check_branch
      %90 = sbr.rel (0) target = $region37
    $region36: #{tpu_custom_call.1} parent=1 // pred_region
      %92 = dma.done [#allocation7], 128
    $region37: #{tpu_custom_call.1} parent=1 // pred_fallthru
      _
    // Predicated region
    $region38: #{tpu_custom_call.1} parent=1 // pred_check
      _
    $region39: #{tpu_custom_call.1} parent=1 // pred_check_branch
      %94 = sbr.rel (0) target = $region41
    $region40: #{tpu_custom_call.1} parent=1 // pred_region
      %96 = dma.done [#allocation7], 1024
    $region41: #{tpu_custom_call.1} parent=1 // pred_fallthru
      _
    // Predicated region
    $region42: #{tpu_custom_call.1} parent=1 // pred_check
      _
    $region43: #{tpu_custom_call.1} parent=1 // pred_check_branch
      %98 = sbr.rel (0) target = $region45
    $region44: #{tpu_custom_call.1} parent=1 // pred_region
      %100 = dma.done [#allocation10], 1024
    $region45: #{tpu_custom_call.1} parent=1 // pred_fallthru
      _
    %s101 = sadd.s32 0, 0
    %p102 = scmp.lt.s32.totalorder %s101, 0
    %s103 = scalar_select %p102, %s101, 0
    %s104 = smul.u32 2, %s103
    %s105 = ssub.s32 1, %s104
    %s106 = smul.u32 8, %s105
    %p108 = scmp.eq.s32.totalorder 0, 0
    // Predicated region
    $region46: #{tpu_custom_call.1} parent=1 // pred_check
      %p109 = pneg %p108
    $region47: #{tpu_custom_call.1} parent=1 // pred_check_branch
      %111 = sbr.rel (%p109) target = $region49
    $region48: #{tpu_custom_call.1} parent=1 // pred_region
      %112 = vst [vmem:[#allocation2] sm:$0xff] 0.0
    $region49: #{tpu_custom_call.1} parent=1 // pred_fallthru
      _
    %s113 = sadd.s32 0, 0
    %s114 = smul.u32 %s113, 16
    %s115 = ssub.s32 8, %s114
    %p116 = scmp.gt.s32.totalorder %s115, 0
    // Predicated region
    $region50: #{tpu_custom_call.1} parent=1 // pred_check
      %p117 = pneg %p116
    $region51: #{tpu_custom_call.1} parent=1 // pred_check_branch
      %119 = sbr.rel (%p117) target = $region53
    $region52: #{tpu_custom_call.1} parent=1 // pred_region
      %v120 = vld [vmem:[#allocation3] sm:$0xff]
      %v121 = vld [vmem:[#allocation3 + $0x8] sm:$0xff]
      %v122 = vpack.c.bf16 %v121, %v120
      %v123 = vld [vmem:[#allocation6] sm:$0xf]
      %v124 = vld [vmem:[#allocation6 + $0x4] sm:$0xf]
      %v125 = vld [vmem:[%s2] sm:$0x1]
      %v127 = vperm.slane %v125, 0
      %v131 = vunpack.c.l.b16 %v123
      %v132 = vunpack.c.l.b16 %v124
      %v133 = vpack.c.b16 %v132, %v131
      %vm135 = vcmask 130048
      %v137 = vsel %vm135, %v122, 0
      %139 = vmatpush.bf16.msra.mxu0 0
      %140 = vmatpush.bf16.msra.mxu0 0
      %141 = vmatpush.bf16.msra.mxu0 0
      %142 = vmatpush.bf16.msra.mxu0 0
      %143 = vmatpush.bf16.msra.mxu0 0
      %144 = vmatpush.bf16.msra.mxu0 0
      %145 = vmatpush.bf16.msra.mxu0 0
      %146 = vmatpush.bf16.msra.mxu0 %v133
      %147 = vmatmul.bf16.gmra.mxu0 %v137
      %v148 = vpop.f32.mrf.mxu0
      %v149 = vadd.f32 %v127, %v148
      %v150 = vpop.f32.mrf.mxu0
      %v151 = vadd.f32 %v127, %v150
      %152 = vdwg.mxu0
      %v153 = vmax.f32 %v149, 0.0
      %v154 = vmax.f32 %v151, 0.0
      %v155 = vpack.c.bf16 %v154, %v153
      %v156 = vld [vmem:[#allocation8] sm:$0xf]
      %v157 = vld [vmem:[#allocation8 + $0x4] sm:$0xf]
      %v158 = vld [vmem:[#allocation8 + $0x8] sm:$0xf]
      %v159 = vld [vmem:[#allocation8 + $0xc] sm:$0xf]
      %v160 = vld [vmem:[#allocation8 + $0x10] sm:$0xf]
      %v161 = vld [vmem:[#allocation8 + $0x14] sm:$0xf]
      %v162 = vld [vmem:[#allocation8 + $0x18] sm:$0xf]
      %v163 = vld [vmem:[#allocation8 + $0x1c] sm:$0xf]
      %v164 = vld [vmem:[#allocation8 + $0x20] sm:$0xf]
      %v165 = vld [vmem:[#allocation8 + $0x24] sm:$0xf]
      %v166 = vld [vmem:[#allocation8 + $0x28] sm:$0xf]
      %v167 = vld [vmem:[#allocation8 + $0x2c] sm:$0xf]
      %v168 = vld [vmem:[#allocation8 + $0x30] sm:$0xf]
      %v169 = vld [vmem:[#allocation8 + $0x34] sm:$0xf]
      %v170 = vld [vmem:[#allocation8 + $0x38] sm:$0xf]
      %v171 = vld [vmem:[#allocation8 + $0x3c] sm:$0xf]
      %v172 = vld [vmem:[%s4] sm:$0x1]
      %v174 = vperm.slane %v172, 0
      %v192 = vunpack.c.l.b16 %v156
      %v193 = vunpack.c.l.b16 %v157
      %v194 = vunpack.c.l.b16 %v158
      %v195 = vunpack.c.l.b16 %v159
      %v196 = vunpack.c.l.b16 %v160
      %v197 = vunpack.c.l.b16 %v161
      %v198 = vunpack.c.l.b16 %v162
      %v199 = vunpack.c.l.b16 %v163
      %v200 = vunpack.c.l.b16 %v164
      %v201 = vunpack.c.l.b16 %v165
      %v202 = vunpack.c.l.b16 %v166
      %v203 = vunpack.c.l.b16 %v167
      %v204 = vunpack.c.l.b16 %v168
      %v205 = vunpack.c.l.b16 %v169
      %v206 = vunpack.c.l.b16 %v170
      %v207 = vunpack.c.l.b16 %v171
      %v208 = vpack.c.b16 %v193, %v192
      %v209 = vpack.c.b16 %v195, %v194
      %v210 = vpack.c.b16 %v197, %v196
      %v211 = vpack.c.b16 %v199, %v198
      %v212 = vpack.c.b16 %v201, %v200
      %v213 = vpack.c.b16 %v203, %v202
      %v214 = vpack.c.b16 %v205, %v204
      %v215 = vpack.c.b16 %v207, %v206
      %224 = vmatpush.bf16.msra.mxu0 %v215
      %225 = vmatpush.bf16.msra.mxu0 %v214
      %226 = vmatpush.bf16.msra.mxu0 %v213
      %227 = vmatpush.bf16.msra.mxu0 %v212
      %228 = vmatpush.bf16.msra.mxu0 %v211
      %229 = vmatpush.bf16.msra.mxu0 %v210
      %230 = vmatpush.bf16.msra.mxu0 %v209
      %231 = vmatpush.bf16.msra.mxu0 %v208
      %232 = vmatmul.bf16.gmra.mxu0 %v155
      %v233 = vpop.f32.mrf.mxu0
      %v234 = vadd.f32 %v174, %v233
      %v235 = vpop.f32.mrf.mxu0
      %v236 = vadd.f32 %v174, %v235
      %237 = vdwg.mxu0
      %v238 = vmax.f32 %v234, 0.0
      %v239 = vmax.f32 %v236, 0.0
      %v240 = vpack.c.bf16 %v239, %v238
      %v241 = vld [vmem:[#allocation9] sm:$0xf]
      %v242 = vld [vmem:[#allocation9 + $0x4] sm:$0xf]
      %v243 = vld [vmem:[#allocation9 + $0x8] sm:$0xf]
      %v244 = vld [vmem:[#allocation9 + $0xc] sm:$0xf]
      %v245 = vld [vmem:[#allocation9 + $0x10] sm:$0xf]
      %v246 = vld [vmem:[#allocation9 + $0x14] sm:$0xf]
      %v247 = vld [vmem:[#allocation9 + $0x18] sm:$0xf]
      %v248 = vld [vmem:[#allocation9 + $0x1c] sm:$0xf]
      %v249 = vld [vmem:[#allocation9 + $0x20] sm:$0xf]
      %v250 = vld [vmem:[#allocation9 + $0x24] sm:$0xf]
      %v251 = vld [vmem:[#allocation9 + $0x28] sm:$0xf]
      %v252 = vld [vmem:[#allocation9 + $0x2c] sm:$0xf]
      %v253 = vld [vmem:[#allocation9 + $0x30] sm:$0xf]
      %v254 = vld [vmem:[#allocation9 + $0x34] sm:$0xf]
      %v255 = vld [vmem:[#allocation9 + $0x38] sm:$0xf]
      %v256 = vld [vmem:[#allocation9 + $0x3c] sm:$0xf]
      %v257 = vld [vmem:[%s6] sm:$0x1]
      %v259 = vperm.slane %v257, 0
      %v277 = vunpack.c.l.b16 %v241
      %v278 = vunpack.c.l.b16 %v242
      %v279 = vunpack.c.l.b16 %v243
      %v280 = vunpack.c.l.b16 %v244
      %v281 = vunpack.c.l.b16 %v245
      %v282 = vunpack.c.l.b16 %v246
      %v283 = vunpack.c.l.b16 %v247
      %v284 = vunpack.c.l.b16 %v248
      %v285 = vunpack.c.l.b16 %v249
      %v286 = vunpack.c.l.b16 %v250
      %v287 = vunpack.c.l.b16 %v251
      %v288 = vunpack.c.l.b16 %v252
      %v289 = vunpack.c.l.b16 %v253
      %v290 = vunpack.c.l.b16 %v254
      %v291 = vunpack.c.l.b16 %v255
      %v292 = vunpack.c.l.b16 %v256
      %v293 = vpack.c.b16 %v278, %v277
      %v294 = vpack.c.b16 %v280, %v279
      %v295 = vpack.c.b16 %v282, %v281
      %v296 = vpack.c.b16 %v284, %v283
      %v297 = vpack.c.b16 %v286, %v285
      %v298 = vpack.c.b16 %v288, %v287
      %v299 = vpack.c.b16 %v290, %v289
      %v300 = vpack.c.b16 %v292, %v291
      %309 = vmatpush.bf16.msra.mxu0 %v300
      %310 = vmatpush.bf16.msra.mxu0 %v299
      %311 = vmatpush.bf16.msra.mxu0 %v298
      %312 = vmatpush.bf16.msra.mxu0 %v297
      %313 = vmatpush.bf16.msra.mxu0 %v296
      %314 = vmatpush.bf16.msra.mxu0 %v295
      %315 = vmatpush.bf16.msra.mxu0 %v294
      %316 = vmatpush.bf16.msra.mxu0 %v293
      %317 = vmatmul.bf16.gmra.mxu0 %v240
      %v318 = vpop.f32.mrf.mxu0
      %v319 = vadd.f32 %v259, %v318
      %v320 = vpop.f32.mrf.mxu0
      %v321 = vadd.f32 %v259, %v320
      %322 = vdwg.mxu0
      %v323 = vmax.f32 %v319, 0.0
      %v324 = vmax.f32 %v321, 0.0
      %p325 = scmp.ge.s32.totalorder %s115, 16
      // Predicated region
      $region54: #{tpu_custom_call.1} parent=52 // pred_check
        %p326 = pneg %p325
      $region55: #{tpu_custom_call.1} parent=52 // pred_check_branch
        %328 = sbr.rel (%p326) target = $region57
      $region56: #{tpu_custom_call.1} parent=52 // pred_region
        %v329 = vmax.f32 %v323, %v324
        %v330 = vld [vmem:[#allocation2] sm:$0xff]
        %v331 = vmax.f32 %v330, %v329
        %332 = vst [vmem:[#allocation2] sm:$0xff] %v331
      $region57: #{tpu_custom_call.1} parent=52 // pred_fallthru
        _
      %p333 = scmp.lt.s32.totalorder %s115, 16
      // Predicated region
      $region58: #{tpu_custom_call.1} parent=52 // pred_check
        %p334 = pneg %p333
      $region59: #{tpu_custom_call.1} parent=52 // pred_check_branch
        %336 = sbr.rel (%p334) target = $region61
      $region60: #{tpu_custom_call.1} parent=52 // pred_region
        %v337 = vlaneseq
        %v338 = vshrl.u32 %v337, 7
        %v339 = vadd.s32 %v338, 8
        %v340 = vstv %s115
        %vm341 = vcmp.lt.s32.totalorder %v338, %v340
        %vm342 = vcmp.lt.s32.totalorder %v339, %v340
        %v343 = vsel %vm341, 1, 0
        %v344 = vsel %vm342, 1, 0
        %vm345 = vcmp.eq.s32.totalorder %v343, 1
        %vm346 = vcmp.eq.s32.totalorder %v344, 1
        %v347 = vsel %vm345, %v323, 0.0
        %v348 = vsel %vm346, %v324, 0.0
        %v349 = vmax.f32 %v347, %v348
        %v350 = vld [vmem:[#allocation2] sm:$0xff]
        %v351 = vmax.f32 %v350, %v349
        %352 = vst [vmem:[#allocation2] sm:$0xff] %v351
      $region61: #{tpu_custom_call.1} parent=52 // pred_fallthru
        _
    $region53: #{tpu_custom_call.1} parent=1 // pred_fallthru
      _
    // Predicated region
    $region62: #{tpu_custom_call.1} parent=1 // pred_check
      %p353 = pneg %p108
    $region63: #{tpu_custom_call.1} parent=1 // pred_check_branch
      %355 = sbr.rel (%p353) target = $region65
    $region64: #{tpu_custom_call.1} parent=1 // pred_region
      %v356 = vld [vmem:[#allocation2] sm:$0xff]
      %v357 = vrot.slane %v356, 4
      %v358 = vmax.f32 %v356, %v357
      %v359 = vrot.slane %v358, 2
      %v360 = vmax.f32 %v358, %v359
      %v361 = vrot.slane %v360, 1
      %v362 = vmax.f32 %v360, %v361
      %363 = vst [vmem:[#allocation11] sm:$0x1] %v362
    $region65: #{tpu_custom_call.1} parent=1 // pred_fallthru
      _
    // Predicated region
    $region66: #{tpu_custom_call.1} parent=1 // pred_check
      _
    $region67: #{tpu_custom_call.1} parent=1 // pred_check_branch
      %365 = sbr.rel (0) target = $region69
    $region68: #{tpu_custom_call.1} parent=1 // pred_region
      %367 = vsyncadd [#allocation5], 0
      %s369 = sshll.u32 [#allocation11], 4
      %s370 = int_to_ptr.vmem [resolvable:$true] %s369
      %s371 = sshll.u32 %s7, 4
      %s372 = int_to_ptr.hbm [resolvable:$true] %s371
      %374 = dma.vmem_to_hbm [thread:$0]  %s370, 16, %s372, [#allocation5]
    $region69: #{tpu_custom_call.1} parent=1 // pred_fallthru
      _
    // Predicated region
    $region70: #{tpu_custom_call.1} parent=1 // pred_check
      _
    $region71: #{tpu_custom_call.1} parent=1 // pred_check_branch
      %376 = sbr.rel (0) target = $region73
    $region72: #{tpu_custom_call.1} parent=1 // pred_region
      %378 = dma.done [#allocation5], 16
    $region73: #{tpu_custom_call.1} parent=1 // pred_fallthru
      _
    %379 = vsyncpa [#allocation4], 1
    %380 = vsyncpa [#allocation7], 1
    %381 = vsyncpa [#allocation10], 1
    %382 = vsyncpa [#allocation5], 1

</llo_original>
